<compile_context>
chip_gen: v7x
topology: tpu7x:2x2x1
jax: 0.10.0
libtpu: 0.0.40
codegen_flags: <defaults>
</compile_context>

<pallas_src>
import jax
import jax.numpy as jnp
from jax.experimental import pallas as pl
from jax.experimental.pallas import tpu as pltpu


def head_kernel(feat_ref, w1t_ref, b1_ref, w2t_ref, out_ref, acc_ref):
    """Fused MLP head block: relu(feat @ W1^T[:, h_blk] + b1[h_blk]) @ W2^T[h_blk, :].

    Grid = (n_h, n_k): h = parallel hidden-dim split, k = reduction over feature dim.
    """
    k = pl.program_id(1)

    @pl.when(k == 0)
    def _():
        acc_ref[...] = jnp.zeros_like(acc_ref)

    # Partial product of the first Linear on the MXU: (B, tk) @ (tk, H_blk) -> f32 acc.
    # feat is resident as (n_k, B, tk); dynamic leading-dim load picks the K chunk.
    acc_ref[...] += jnp.dot(
        feat_ref[k], w1t_ref[...], preferred_element_type=jnp.float32
    )

    @pl.when(k == pl.num_programs(1) - 1)
    def _():
        # bias + ReLU on the f32 accumulator, then the tiny second matmul in bf16.
        h = jnp.maximum(acc_ref[...] + b1_ref[...], 0.0).astype(jnp.bfloat16)
        out_ref[...] = jnp.dot(h, w2t_ref[...], preferred_element_type=jnp.float32)


def _round_up(x, m):
    return -(-x // m) * m


def _pick_tk(D, cap=3840):
    """Largest multiple of 128 that divides D and is <= cap."""
    tk = 0
    for cand in range(128, min(cap, D) + 1, 128):
        if D % cand == 0:
            tk = cand
    if tk == 0:
        raise ValueError(
            f"feature dim {D} has no K-tile that is a multiple of 128 and <= {cap}"
        )
    return tk


def prepare_head_params(w1, b1, w2, b2):
    """One-time (init-time) preprocessing of the head parameters.

    Hoisted out of the per-call path per review: at the real shape the per-call
    transpose+cast of W1 moved ~3x the HBM bytes of the kernel itself.
    """
    w1t = jnp.transpose(w1).astype(jnp.bfloat16)   # (D, H), contiguous K tiles
    b1r = b1.reshape(1, -1).astype(jnp.float32)    # (1, H)
    w2t = jnp.transpose(w2).astype(jnp.bfloat16)   # (H, C), resident, tiny
    b2r = b2.reshape(1, -1).astype(jnp.float32)    # (1, C)
    return w1t, b1r, w2t, b2r


def deepfakes_head(feat, w1t, b1r, w2t, b2r, *, tk=None, n_h=2):
    """feat: (B, D); w1t: (D, H) bf16; b1r: (1, H); w2t: (H, C) bf16; b2r: (1, C)."""
    B, D = feat.shape
    D2, H = w1t.shape
    H2, C = w2t.shape
    assert D2 == D and H2 == H, "parameter shapes inconsistent with feat"
    out_dtype = feat.dtype

    if tk is None:
        tk = _pick_tk(D)
    assert D % tk == 0 and tk % 128 == 0, "K tile must be a multiple of 128 dividing D"
    n_k = D // tk

    # Hidden-dim split for the parallel axis (2 TensorCores on v7x). Fall back to 1
    # block if H does not split into lane-aligned halves.
    if H % n_h != 0 or (H // n_h) % 128 != 0:
        n_h = 1
    H_blk = H // n_h

    # feat resident in VMEM as (n_k, B, tk): dynamic leading-dim indexing in-kernel,
    # no per-step feat DMA. Tiny reshape/transpose (~B*D bf16) per call.
    feat3 = feat.astype(jnp.bfloat16).reshape(B, n_k, tk).transpose(1, 0, 2)

    # Actual VMEM footprint (+25% headroom); capped below v7x's 64 MiB physical VMEM.
    c_pad = _round_up(C, 128)
    b_pad = _round_up(B, 8)
    footprint = (
        2 * (tk * H_blk * 2)            # W1^T K-tile, double-buffered, bf16
        + 2 * (n_k * b_pad * tk * 2)    # resident feat (conservatively x2 buffers)
        + 2 * (8 * H_blk * 4)           # b1 block (sublane-padded)
        + 2 * (H_blk * c_pad * 2)       # resident W2^T block, bf16, lane-padded
        + 2 * (b_pad * c_pad * 4)       # output tile (lane-padded)
        + b_pad * H_blk * 4             # f32 accumulator scratch
    )
    vmem_limit = int(min(max(int(footprint * 1.25), 32 << 20), 56 << 20))

    cost = pl.CostEstimate(
        flops=2 * B * D * H + 2 * B * H * C,
        transcendentals=0,
        bytes_accessed=B * D * 2 + D * H * 2 + H * C * 2 + H * 4 + n_h * B * C * 4,
    )

    partial = pl.pallas_call(
        head_kernel,
        out_shape=jax.ShapeDtypeStruct((n_h, B, C), jnp.float32),
        grid_spec=pltpu.PrefetchScalarGridSpec(
            num_scalar_prefetch=0,
            grid=(n_h, n_k),                                    # (parallel H, reduce K)
            in_specs=[
                pl.BlockSpec((n_k, B, tk), lambda h, k: (0, 0, 0)),   # feat, resident
                pl.BlockSpec((tk, H_blk), lambda h, k: (k, h)),       # W1^T K-tile (bf16)
                pl.BlockSpec((1, H_blk), lambda h, k: (0, h)),        # b1 block (f32)
                pl.BlockSpec((H_blk, C), lambda h, k: (h, 0)),        # W2^T block (bf16)
            ],
            out_specs=pl.BlockSpec((None, B, C), lambda h, k: (h, 0, 0)),
            scratch_shapes=[pltpu.VMEM((B, H_blk), jnp.float32)],     # first-Linear acc
        ),
        compiler_params=pltpu.CompilerParams(
            dimension_semantics=("parallel", "arbitrary"),
            vmem_limit_bytes=vmem_limit,
        ),
        cost_estimate=cost,
    )(feat3, w1t, b1r, w2t)

    # Sum the per-H-block partial logits and add the second bias (tiny XLA epilogue).
    out = partial.sum(axis=0) + b2r
    return out.astype(out_dtype)


if __name__ == "__main__":
    # Small shapes consistent with the head (scaled down from dim_in=7680, hidden=2048).
    B, D, H, C = 8, 1024, 512, 2

    key = jax.random.PRNGKey(0)
    k_feat, k_w1, k_b1, k_w2, k_b2 = jax.random.split(key, 5)

    feat = jax.random.normal(k_feat, (B, D), dtype=jnp.float32)
    w1 = jax.random.normal(k_w1, (H, D), dtype=jnp.float32) * 0.02
    b1 = jax.random.normal(k_b1, (H,), dtype=jnp.float32) * 0.02
    w2 = jax.random.normal(k_w2, (C, H), dtype=jnp.float32) * 0.02
    b2 = jax.random.normal(k_b2, (C,), dtype=jnp.float32) * 0.02

    # One-time parameter preprocessing (hoisted out of the per-call path).
    w1t, b1r, w2t, b2r = prepare_head_params(w1, b1, w2, b2)

    # Force a 2-step K reduction and 2 H blocks at the test shapes
    # (the real dim_in=7680 / hidden=2048 auto-picks tk=3840, H_blk=1024).
    out = deepfakes_head(feat, w1t, b1r, w2t, b2r, tk=512, n_h=2)
    out = jax.block_until_ready(out)

    # Reference in plain JAX (dropout = identity in eval mode). Tolerances widened for
    # the bf16 cast of the streamed operands.
    ref = jnp.maximum(feat @ w1.T + b1, 0.0) @ w2.T + b2
    assert out.shape == (B, C)
    assert jnp.allclose(out, ref, atol=2e-2, rtol=2e-2), "mismatch vs reference"

    print("KERNEL_OK")
</pallas_src>

<mosaic_0001>
module attributes {stable_mosaic.version = 11 : i64} {
  func.func @head_kernel(%arg0: i32, %arg1: i32, %arg2: memref<2x8x512xbf16, #tpu.memory_space<vmem>>, %arg3: memref<512x256xbf16, #tpu.memory_space<vmem>>, %arg4: memref<1x256xf32, #tpu.memory_space<vmem>>, %arg5: memref<256x2xbf16, #tpu.memory_space<vmem>>, %arg6: memref<1x8x2xf32, #tpu.memory_space<vmem>>, %arg7: memref<8x256xf32, #tpu.memory_space<vmem>>) attributes {dimension_semantics = [#tpu.dimension_semantics<parallel>, #tpu.dimension_semantics<arbitrary>], iteration_bounds = array<i64: 2, 2>, scalar_prefetch = 0 : i64, scratch_operands = 1 : i64, tpu.core_type = #tpu.core_type<tc>, window_params = [{pipeline_mode = #tpu.pipeline_mode<synchronous>, transform_indices = @transform_0, window_bounds = array<i64: 2, 8, 512>}, {transform_indices = @transform_1, window_bounds = array<i64: 512, 256>}, {transform_indices = @transform_2, window_bounds = array<i64: 1, 256>}, {transform_indices = @transform_3, window_bounds = array<i64: 256, 2>}, {transform_indices = @transform_4, window_bounds = array<i64: 1, 8, 2>}]} {
    %c0_i32 = arith.constant 0 : i32
    %0 = arith.cmpi eq, %arg1, %c0_i32 : i32
    %1 = arith.extui %0 : i1 to i32
    %c0_i32_0 = arith.constant 0 : i32
    %2 = arith.cmpi ne, %1, %c0_i32_0 : i32
    scf.if %2 {
      %cst_9 = arith.constant 0.000000e+00 : f32
      %14 = vector.broadcast %cst_9 : f32 to vector<8x256xf32>
      %c0_10 = arith.constant 0 : index
      %c0_11 = arith.constant 0 : index
      %15 = vector.load %arg7[%c0_10, %c0_11] : memref<8x256xf32, #tpu.memory_space<vmem>>, vector<8x256xf32>
      tpu.vector_store %arg7[%c0_10, %c0_11], %14 {strides = array<i32>} : memref<8x256xf32, #tpu.memory_space<vmem>>, vector<8x256xf32>,
    } else {
    }
    %c0 = arith.constant 0 : index
    %c0_1 = arith.constant 0 : index
    %3 = vector.load %arg7[%c0, %c0_1] : memref<8x256xf32, #tpu.memory_space<vmem>>, vector<8x256xf32>
    %4 = arith.index_cast %arg1 : i32 to index
    %c0_2 = arith.constant 0 : index
    %c0_3 = arith.constant 0 : index
    %5 = vector.load %arg2[%4, %c0_2, %c0_3] : memref<2x8x512xbf16, #tpu.memory_space<vmem>>, vector<1x8x512xbf16>
    %6 = vector.shape_cast %5 : vector<1x8x512xbf16> to vector<8x512xbf16>
    %c0_4 = arith.constant 0 : index
    %c0_5 = arith.constant 0 : index
    %7 = vector.load %arg3[%c0_4, %c0_5] : memref<512x256xbf16, #tpu.memory_space<vmem>>, vector<512x256xbf16>
    %cst = arith.constant dense<0.000000e+00> : vector<8x256xf32>
    %8 = tpu.matmul %6, %7, %cst {dimension_numbers = #tpu.dot_dimension_numbers<[1], [0], [0], [1], [0, 0, 1, 1], [], []>} : vector<8x512xbf16>, vector<512x256xbf16>, vector<8x256xf32> -> vector<8x256xf32>
    %9 = arith.addf %3, %8 : vector<8x256xf32>
    %c0_6 = arith.constant 0 : index
    %c0_7 = arith.constant 0 : index
    %10 = vector.load %arg7[%c0_6, %c0_7] : memref<8x256xf32, #tpu.memory_space<vmem>>, vector<8x256xf32>
    tpu.vector_store %arg7[%c0_6, %c0_7], %9 {strides = array<i32>} : memref<8x256xf32, #tpu.memory_space<vmem>>, vector<8x256xf32>,
    %c1_i32 = arith.constant 1 : i32
    %11 = arith.cmpi eq, %arg1, %c1_i32 : i32
    %12 = arith.extui %11 : i1 to i32
    %c0_i32_8 = arith.constant 0 : i32
    %13 = arith.cmpi ne, %12, %c0_i32_8 : i32
    scf.if %13 {
      %c0_9 = arith.constant 0 : index
      %c0_10 = arith.constant 0 : index
      %14 = vector.load %arg7[%c0_9, %c0_10] : memref<8x256xf32, #tpu.memory_space<vmem>>, vector<8x256xf32>
      %c0_11 = arith.constant 0 : index
      %c0_12 = arith.constant 0 : index
      %15 = vector.load %arg4[%c0_11, %c0_12] : memref<1x256xf32, #tpu.memory_space<vmem>>, vector<1x256xf32>
      %16 = vector.broadcast %15 : vector<1x256xf32> to vector<8x256xf32>
      %17 = arith.addf %14, %16 : vector<8x256xf32>
      %cst_13 = arith.constant 0.000000e+00 : f32
      %18 = vector.broadcast %cst_13 : f32 to vector<8x256xf32>
      %19 = arith.maximumf %17, %18 : vector<8x256xf32>
      %20 = arith.truncf %19 : vector<8x256xf32> to vector<8x256xbf16>
      %c0_14 = arith.constant 0 : index
      %c0_15 = arith.constant 0 : index
      %21 = vector.load %arg5[%c0_14, %c0_15] : memref<256x2xbf16, #tpu.memory_space<vmem>>, vector<256x2xbf16>
      %cst_16 = arith.constant dense<0.000000e+00> : vector<8x2xf32>
      %22 = tpu.matmul %20, %21, %cst_16 {dimension_numbers = #tpu.dot_dimension_numbers<[1], [0], [0], [1], [0, 0, 1, 1], [], []>} : vector<8x256xbf16>, vector<256x2xbf16>, vector<8x2xf32> -> vector<8x2xf32>
      %c0_17 = arith.constant 0 : index
      %c0_18 = arith.constant 0 : index
      %c0_19 = arith.constant 0 : index
      %23 = vector.load %arg6[%c0_17, %c0_18, %c0_19] : memref<1x8x2xf32, #tpu.memory_space<vmem>>, vector<1x8x2xf32>
      %24 = vector.shape_cast %23 : vector<1x8x2xf32> to vector<8x2xf32>
      %25 = vector.shape_cast %22 : vector<8x2xf32> to vector<1x8x2xf32>
      tpu.vector_store %arg6[%c0_17, %c0_18, %c0_19], %25 {strides = array<i32>} : memref<1x8x2xf32, #tpu.memory_space<vmem>>, vector<1x8x2xf32>,
    } else {
    }
    return
  }
  func.func @transform_0(%arg0: i32, %arg1: i32) -> (i32, i32, i32) {
    %c0_i32 = arith.constant 0 : i32
    %c0_i32_0 = arith.constant 0 : i32
    %c0_i32_1 = arith.constant 0 : i32
    %c0_i32_2 = arith.constant 0 : i32
    return %c0_i32, %c0_i32_0, %c0_i32_1 : i32, i32, i32
  }
  func.func @transform_1(%arg0: i32, %arg1: i32) -> (i32, i32) {
    %c0_i32 = arith.constant 0 : i32
    return %arg1, %arg0 : i32, i32
  }
  func.func @transform_2(%arg0: i32, %arg1: i32) -> (i32, i32) {
    %c0_i32 = arith.constant 0 : i32
    %c0_i32_0 = arith.constant 0 : i32
    return %c0_i32, %arg0 : i32, i32
  }
  func.func @transform_3(%arg0: i32, %arg1: i32) -> (i32, i32) {
    %c0_i32 = arith.constant 0 : i32
    %c0_i32_0 = arith.constant 0 : i32
    return %arg0, %c0_i32 : i32, i32
  }
  func.func @transform_4(%arg0: i32, %arg1: i32) -> (i32, i32, i32) {
    %c0_i32 = arith.constant 0 : i32
    %c0_i32_0 = arith.constant 0 : i32
    %c0_i32_1 = arith.constant 0 : i32
    return %arg0, %c0_i32, %c0_i32_0 : i32, i32, i32
  }
}

</mosaic_0001>

<llo_original>
// kernel: tpu_custom_call.1
$region0: #{tpu_custom_call.1}
  #allocation0 [shape = 'u32[]', space=smem, size = 0x4, offset = 0x4, fixed_abs, tag = 'smem constant byte address 0x4 - core index']
  #allocation1 [shape = 'u32[144,128]{1,0:T(1,128)}', space=vmem, size = 0x12000, scoped, tag = 'internal scratch']
  #allocation2 [shape = 'f32[8,256]{1,0:T(8,128)}', space=vmem, size = 0x2000, scoped, tag = 'scratch operand']
  %s0 = inlined_call_operand.vmem [shape: bf16[2,8,512], index: 0, kind: input, shape index: {}]
  %s1 = inlined_call_operand.hbm [shape: bf16[1024,512], index: 1, kind: input, shape index: {}]
  %s2 = inlined_call_operand.vmem [shape: f32[1,512], index: 2, kind: input, shape index: {}]
  %s3 = inlined_call_operand.vmem [shape: bf16[512,2], index: 3, kind: input, shape index: {}]
  %s4 = inlined_call_operand.vmem [shape: f32[2,8,2], index: 4, kind: output, shape index: {}]
  %s5 = sld [smem:[#allocation0]]
  $region61: #{tpu_custom_call.1} parent=0
    _
  %s7 = ssub.s32 1, %s5
  %s8 = scalar_select 0, %s7, %s5
  $region1: #{tpu_custom_call.1} parent=0
    #allocation3 [shape = 'u8[524288]{0}', space=vmem, size = 0x80000, scoped, tag = 'input window, operand 1']
    #allocation4 [shape = 's32[2]{0}', space=sflag, size = 0x8, scoped, tag = 'scoped memory for tpu_custom_call.1']
    %9 = vsyncpa [#allocation4], 0
    %s10 = scalar_lea.sflag [#allocation4], 1
    %11 = vsyncpa %s10, 0
    loop: start=0, step=1, limit=6
    $region2: #{tpu_custom_call.1} parent=1 // loop_pre_header
      _
    $region3: #{tpu_custom_call.1} parent=1 // loop_header
      %s13 = sphi 0, %s17
      %p14 = scmp.ge.s32.totalorder %s13, 6
      %s20 = sphi 0, %s32
      %s21 = sphi 0, %s28
      %s22 = sphi 0, %s20
      %s23 = sphi 0, %s21
      %s24 = sphi 0, %s22
      %s25 = sphi 0, %s23
      %s33 = sphi 0, %s33
      %s35 = sphi 0, %s33
      %s36 = sphi 0, %s35
      %s50 = sphi 0, %s36
      %s58 = sphi 0, %s60
      %s61 = sphi 0, %s58
      %s62 = sphi 0, %s61
      %s78 = sphi 0, %s62
      %s84 = sphi 0, %s86
      %s87 = sphi 0, %s84
      %s88 = sphi 0, %s87
      %s104 = sphi 0, %s88
      %s110 = sphi 0, %s112
      %s113 = sphi 0, %s110
      %s114 = sphi 0, %s113
      %s130 = sphi 0, %s114
      %s136 = sphi 0, %s138
      %s139 = sphi 0, %s136
      %s140 = sphi 0, %s139
      %s156 = sphi 0, %s140
    $region4: #{tpu_custom_call.1} parent=1 // loop_header_branch
      %16 = sbr.rel (%p14) target = $region8
    $region5: #{tpu_custom_call.1} parent=1 // loop_body
      %s18 = ssub.s32 %s13, 1
      %s19 = ssub.s32 %s13, 2
      %s26 = sadd.s32 1, %s21
      %p27 = scmp.ge.s32.totalorder %s26, 2
      %s28 = scalar_select %p27, 0, %s26
      %s29 = sadd.s32 1, %s20
      %s30 = scalar_select %p27, %s29, %s20
      %p31 = scmp.ge.s32.totalorder %s30, 2
      %s32 = scalar_select %p31, 0, %s30
      %s34 = sadd.s32 %s33, 1
      %p37 = scmp.eq.s32.totalorder %s13, 3
      %p38 = scmp.ne.s32.totalorder %s33, %s35
      %p39 = scmp.eq.s32.totalorder %s13, 0
      %p40 = por %p38, %p39
      %p41 = scmp.ne.s32.totalorder %s33, %s35
      %p42 = scmp.eq.s32.totalorder %s18, 3
      %p43 = por %p41, %p42
      %p44 = scmp.ne.s32.totalorder %s35, %s36
      %p45 = scmp.eq.s32.totalorder %s18, 0
      %p46 = por %p44, %p45
      %p47 = scmp.ne.s32.totalorder %s35, %s36
      %p48 = scmp.eq.s32.totalorder %s19, 3
      %p49 = por %p47, %p48
      %p51 = scmp.ne.s32.totalorder %s36, %s50
      %p52 = scmp.eq.s32.totalorder %s19, 0
      %p53 = por %p51, %p52
      %s54 = ssub.s32 %s21, %s28
      %s55 = ssub.s32 %s20, %s32
      %s56 = sor.u32 %s54, %s55
      %p57 = scmp.eq.s32.totalorder %s56, 0
      %s59 = sadd.s32 %s58, 1
      %s60 = scalar_select %p57, %s58, %s59
      %p63 = pneg %p57
      %p64 = scmp.eq.s32.totalorder %s13, 3
      %p65 = por %p63, %p64
      %p66 = scmp.ne.s32.totalorder %s58, %s61
      %p67 = scmp.eq.s32.totalorder %s13, 0
      %p68 = por %p66, %p67
      %p69 = scmp.ne.s32.totalorder %s58, %s61
      %p70 = scmp.eq.s32.totalorder %s18, 3
      %p71 = por %p69, %p70
      %p72 = scmp.ne.s32.totalorder %s61, %s62
      %p73 = scmp.eq.s32.totalorder %s18, 0
      %p74 = por %p72, %p73
      %p75 = scmp.ne.s32.totalorder %s61, %s62
      %p76 = scmp.eq.s32.totalorder %s19, 3
      %p77 = por %p75, %p76
      %p79 = scmp.ne.s32.totalorder %s62, %s78
      %p80 = scmp.eq.s32.totalorder %s19, 0
      %p81 = por %p79, %p80
      %s82 = ssub.s32 %s20, %s32
      %p83 = scmp.eq.s32.totalorder %s82, 0
      %s85 = sadd.s32 %s84, 1
      %s86 = scalar_select %p83, %s84, %s85
      %p89 = pneg %p83
      %p90 = scmp.eq.s32.totalorder %s13, 3
      %p91 = por %p89, %p90
      %p92 = scmp.ne.s32.totalorder %s84, %s87
      %p93 = scmp.eq.s32.totalorder %s13, 0
      %p94 = por %p92, %p93
      %p95 = scmp.ne.s32.totalorder %s84, %s87
      %p96 = scmp.eq.s32.totalorder %s18, 3
      %p97 = por %p95, %p96
      %p98 = scmp.ne.s32.totalorder %s87, %s88
      %p99 = scmp.eq.s32.totalorder %s18, 0
      %p100 = por %p98, %p99
      %p101 = scmp.ne.s32.totalorder %s87, %s88
      %p102 = scmp.eq.s32.totalorder %s19, 3
      %p103 = por %p101, %p102
      %p105 = scmp.ne.s32.totalorder %s88, %s104
      %p106 = scmp.eq.s32.totalorder %s19, 0
      %p107 = por %p105, %p106
      %s108 = ssub.s32 %s20, %s32
      %p109 = scmp.eq.s32.totalorder %s108, 0
      %s111 = sadd.s32 %s110, 1
      %s112 = scalar_select %p109, %s110, %s111
      %p115 = pneg %p109
      %p116 = scmp.eq.s32.totalorder %s13, 3
      %p117 = por %p115, %p116
      %p118 = scmp.ne.s32.totalorder %s110, %s113
      %p119 = scmp.eq.s32.totalorder %s13, 0
      %p120 = por %p118, %p119
      %p121 = scmp.ne.s32.totalorder %s110, %s113
      %p122 = scmp.eq.s32.totalorder %s18, 3
      %p123 = por %p121, %p122
      %p124 = scmp.ne.s32.totalorder %s113, %s114
      %p125 = scmp.eq.s32.totalorder %s18, 0
      %p126 = por %p124, %p125
      %p127 = scmp.ne.s32.totalorder %s113, %s114
      %p128 = scmp.eq.s32.totalorder %s19, 3
      %p129 = por %p127, %p128
      %p131 = scmp.ne.s32.totalorder %s114, %s130
      %p132 = scmp.eq.s32.totalorder %s19, 0
      %p133 = por %p131, %p132
      %s134 = ssub.s32 %s20, %s32
      %p135 = scmp.eq.s32.totalorder %s134, 0
      %s137 = sadd.s32 %s136, 1
      %s138 = scalar_select %p135, %s136, %s137
      %p141 = pneg %p135
      %p142 = scmp.eq.s32.totalorder %s13, 3
      %p143 = por %p141, %p142
      %p144 = scmp.ne.s32.totalorder %s136, %s139
      %p145 = scmp.eq.s32.totalorder %s13, 0
      %p146 = por %p144, %p145
      %p147 = scmp.ne.s32.totalorder %s136, %s139
      %p148 = scmp.eq.s32.totalorder %s18, 3
      %p149 = por %p147, %p148
      %p150 = scmp.ne.s32.totalorder %s139, %s140
      %p151 = scmp.eq.s32.totalorder %s18, 0
      %p152 = por %p150, %p151
      %p153 = scmp.ne.s32.totalorder %s139, %s140
      %p154 = scmp.eq.s32.totalorder %s19, 3
      %p155 = por %p153, %p154
      %p157 = scmp.ne.s32.totalorder %s140, %s156
      %p158 = scmp.eq.s32.totalorder %s19, 0
      %p159 = por %p157, %p158
      %p160 = scmp.le.s32.totalorder 1, %s13
      %p161 = scmp.lt.s32.totalorder %s13, 5
      %p162 = pnand %p160, %p161
      %p163 = pneg %p162
      // Predicated region
      $region9: #{tpu_custom_call.1} parent=5 // pred_check
        _
      $region10: #{tpu_custom_call.1} parent=5 // pred_check_branch
        %165 = sbr.rel (%p162) target = $region12
      $region11: #{tpu_custom_call.1} parent=5 // pred_region
        %s166 = ssub.s32 %s13, 1
        // Predicated region
        $region13: #{tpu_custom_call.1} parent=11 // pred_check
          %p167 = pneg %p46
        $region14: #{tpu_custom_call.1} parent=11 // pred_check_branch
          %169 = sbr.rel (%p167) target = $region16
        $region15: #{tpu_custom_call.1} parent=11 // pred_region
          _
        $region16: #{tpu_custom_call.1} parent=11 // pred_fallthru
          _
      $region12: #{tpu_custom_call.1} parent=5 // pred_fallthru
        _
      %p170 = scmp.lt.s32.totalorder %s13, 4
      // Predicated region
      $region17: #{tpu_custom_call.1} parent=5 // pred_check
        %p171 = pneg %p170
      $region18: #{tpu_custom_call.1} parent=5 // pred_check_branch
        %173 = sbr.rel (%p171) target = $region20
      $region19: #{tpu_custom_call.1} parent=5 // pred_region
        // Predicated region
        $region21: #{tpu_custom_call.1} parent=19 // pred_check
          %p174 = pneg %p68
        $region22: #{tpu_custom_call.1} parent=19 // pred_check_branch
          %176 = sbr.rel (%p174) target = $region24
        $region23: #{tpu_custom_call.1} parent=19 // pred_region
          %s177 = sand.u32 %s58, 1
          %s178 = scalar_lea.sflag [#allocation4], %s177
          %s179 = sand.u32 %s58, 1
          %s180 = smul.addr %s179, 512
          %s181 = scalar_lea.vmem [#allocation3], %s180
          %s182 = smul.u32 64, %s21
          %s183 = smul.u32 2, %s20
          %s185 = ssub.s32 8192, 8192
          %186 = vsyncadd %s178, %s185
          %s187 = smul.addr %s182, 4
          %s188 = sadd.s32 %s183, %s187
          %s189 = smul.addr %s188, 64
          %s190 = scalar_lea.hbm %s1, %s189
          %s191 = sshll.u32 %s181, 4
          %s192 = int_to_ptr.vmem [resolvable:$true] %s191
          %197 = dma.hbm_to_vmem [thread:$0]  %s190, 8192, %s192, %s178, 256, 128, 8
        $region24: #{tpu_custom_call.1} parent=19 // pred_fallthru
          _
        // Predicated region
        $region25: #{tpu_custom_call.1} parent=19 // pred_check
          %p198 = pneg %p94
        $region26: #{tpu_custom_call.1} parent=19 // pred_check_branch
          %200 = sbr.rel (%p198) target = $region28
        $region27: #{tpu_custom_call.1} parent=19 // pred_region
          %s201 = smul.u32 2, %s20
          %p202 = scmp.lt.s32.totalorder %s201, 3
          %s203 = scalar_select %p202, %s201, 3
          %s204 = scalar_lea.vmem %s2, %s203
          %s205 = smul.u32 2, %s20
        $region28: #{tpu_custom_call.1} parent=19 // pred_fallthru
          _
        // Predicated region
        $region29: #{tpu_custom_call.1} parent=19 // pred_check
          %p206 = pneg %p120
        $region30: #{tpu_custom_call.1} parent=19 // pred_check_branch
          %208 = sbr.rel (%p206) target = $region32
        $region31: #{tpu_custom_call.1} parent=19 // pred_region
          %s209 = smul.u32 32, %s20
          %p210 = scmp.lt.s32.totalorder %s209, 63
          %s211 = scalar_select %p210, %s209, 63
          %s212 = smul.addr %s211, 4
          %s213 = scalar_lea.vmem %s3, %s212
          %s214 = smul.u32 32, %s20
        $region32: #{tpu_custom_call.1} parent=19 // pred_fallthru
          _
      $region20: #{tpu_custom_call.1} parent=5 // pred_fallthru
        _
      %p215 = scmp.le.s32.totalorder 1, %s13
      %p216 = scmp.lt.s32.totalorder %s13, 5
      %p217 = pnand %p215, %p216
      %p218 = pneg %p217
      // Predicated region
      $region33: #{tpu_custom_call.1} parent=5 // pred_check
        _
      $region34: #{tpu_custom_call.1} parent=5 // pred_check_branch
        %220 = sbr.rel (%p217) target = $region36
      $region35: #{tpu_custom_call.1} parent=5 // pred_region
        %s221 = ssub.s32 %s13, 1
        %s222 = sand.u32 %s61, 1
        %s223 = scalar_lea.sflag [#allocation4], %s222
        %s224 = sand.u32 %s61, 1
        %s225 = smul.addr %s224, 512
        %s226 = scalar_lea.vmem [#allocation3], %s225
        // Predicated region
        $region37: #{tpu_custom_call.1} parent=35 // pred_check
          %p227 = pneg %p74
        $region38: #{tpu_custom_call.1} parent=35 // pred_check_branch
          %229 = sbr.rel (%p227) target = $region40
        $region39: #{tpu_custom_call.1} parent=35 // pred_region
          %230 = dma.done %s223, 8192
        $region40: #{tpu_custom_call.1} parent=35 // pred_fallthru
          _
        %p231 = pneg %p46
        %p232 = pneg %p43
        %s233 = sand.u32 %s61, 1
        %s234 = scalar_lea.sflag [#allocation4], %s233
        %s235 = sand.u32 %s61, 1
        %s236 = smul.addr %s235, 512
        %s237 = scalar_lea.vmem [#allocation3], %s236
        %p238 = pneg %p74
        %p239 = pneg %p71
        %s240 = smul.u32 2, %s22
        %p241 = scmp.lt.s32.totalorder %s240, 3
        %s242 = scalar_select %p241, %s240, 3
        %s243 = scalar_lea.vmem %s2, %s242
        %p244 = pneg %p100
        %p245 = pneg %p97
        %s246 = smul.u32 32, %s22
        %p247 = scmp.lt.s32.totalorder %s246, 63
        %s248 = scalar_select %p247, %s246, 63
        %s249 = smul.addr %s248, 4
        %s250 = scalar_lea.vmem %s3, %s249
        %p251 = pneg %p126
        %p252 = pneg %p123
        %p253 = pneg %p152
        %p254 = pneg %p149
        %p255 = scmp.lt.s32.totalorder %s22, 1
        %s256 = scalar_select %p255, %s22, 1
        %s257 = smul.addr %s256, 8
        %s258 = scalar_lea.vmem %s4, %s257
        %s259 = smul.u32 64, %s23
        %s260 = smul.u32 2, %s22
        %s261 = smul.u32 2, %s22
        %p262 = scmp.lt.s32.totalorder %s261, 3
        %s263 = scalar_select %p262, %s261, 3
        %s264 = scalar_lea.vmem %s2, %s263
        %s265 = smul.u32 2, %s22
        %s266 = smul.u32 32, %s22
        %p267 = scmp.lt.s32.totalorder %s266, 63
        %s268 = scalar_select %p267, %s266, 63
        %s269 = smul.addr %s268, 4
        %s270 = scalar_lea.vmem %s3, %s269
        %s271 = smul.u32 32, %s22
        %p272 = scmp.lt.s32.totalorder %s22, 1
        %s273 = scalar_select %p272, %s22, 1
        %s274 = smul.addr %s273, 8
        %s275 = scalar_lea.vmem %s4, %s274
        %p277 = scmp.eq.s32.totalorder %s23, 0
        // Predicated region
        $region41: #{tpu_custom_call.1} parent=35 // pred_check
          %p278 = pneg %p277
        $region42: #{tpu_custom_call.1} parent=35 // pred_check_branch
          %280 = sbr.rel (%p278) target = $region44
        $region43: #{tpu_custom_call.1} parent=35 // pred_region
          %281 = vst [vmem:[#allocation2] sm:$0xff] 0.0
          %282 = vst [vmem:[#allocation2 + $0x8] sm:$0xff] 0.0
        $region44: #{tpu_custom_call.1} parent=35 // pred_fallthru
          _
        %v283 = vld [vmem:[#allocation2] sm:$0xff]
        %v284 = vld [vmem:[#allocation2 + $0x8] sm:$0xff]
        %s285 = smul.u32 %s23, 4
        %s286 = smul.addr %s285, 4
        %s287 = scalar_lea.vmem %s0, %s286
        %v288 = vld [vmem:[%s287] sm:$0xff]
        %v289 = vld [vmem:[%s287 + $0x8] sm:$0xff]
        %v290 = vld [vmem:[%s226] sm:$0xff]
        %v291 = vld [vmem:[%s226 + $0x8] sm:$0xff]
        %v292 = vld [vmem:[%s226 + $0x10] sm:$0xff]
        %v293 = vld [vmem:[%s226 + $0x18] sm:$0xff]
        %v294 = vld [vmem:[%s226 + $0x20] sm:$0xff]
        %v295 = vld [vmem:[%s226 + $0x28] sm:$0xff]
        %v296 = vld [vmem:[%s226 + $0x30] sm:$0xff]
        %v297 = vld [vmem:[%s226 + $0x38] sm:$0xff]
        %v298 = vld [vmem:[%s226 + $0x40] sm:$0xff]
        %v299 = vld [vmem:[%s226 + $0x48] sm:$0xff]
        %v300 = vld [vmem:[%s226 + $0x50] sm:$0xff]
        %v301 = vld [vmem:[%s226 + $0x58] sm:$0xff]
        %v302 = vld [vmem:[%s226 + $0x60] sm:$0xff]
        %v303 = vld [vmem:[%s226 + $0x68] sm:$0xff]
        %v304 = vld [vmem:[%s226 + $0x70] sm:$0xff]
        %v305 = vld [vmem:[%s226 + $0x78] sm:$0xff]
        %v306 = vld [vmem:[%s226 + $0x80] sm:$0xff]
        %v307 = vld [vmem:[%s226 + $0x88] sm:$0xff]
        %v308 = vld [vmem:[%s226 + $0x90] sm:$0xff]
        %v309 = vld [vmem:[%s226 + $0x98] sm:$0xff]
        %v310 = vld [vmem:[%s226 + $0xa0] sm:$0xff]
        %v311 = vld [vmem:[%s226 + $0xa8] sm:$0xff]
        %v312 = vld [vmem:[%s226 + $0xb0] sm:$0xff]
        %v313 = vld [vmem:[%s226 + $0xb8] sm:$0xff]
        %v314 = vld [vmem:[%s226 + $0xc0] sm:$0xff]
        %v315 = vld [vmem:[%s226 + $0xc8] sm:$0xff]
        %v316 = vld [vmem:[%s226 + $0xd0] sm:$0xff]
        %v317 = vld [vmem:[%s226 + $0xd8] sm:$0xff]
        %v318 = vld [vmem:[%s226 + $0xe0] sm:$0xff]
        %v319 = vld [vmem:[%s226 + $0xe8] sm:$0xff]
        %v320 = vld [vmem:[%s226 + $0xf0] sm:$0xff]
        %v321 = vld [vmem:[%s226 + $0xf8] sm:$0xff]
        %v322 = vld [vmem:[%s226 + $0x100] sm:$0xff]
        %v323 = vld [vmem:[%s226 + $0x108] sm:$0xff]
        %v324 = vld [vmem:[%s226 + $0x110] sm:$0xff]
        %v325 = vld [vmem:[%s226 + $0x118] sm:$0xff]
        %v326 = vld [vmem:[%s226 + $0x120] sm:$0xff]
        %v327 = vld [vmem:[%s226 + $0x128] sm:$0xff]
        %v328 = vld [vmem:[%s226 + $0x130] sm:$0xff]
        %v329 = vld [vmem:[%s226 + $0x138] sm:$0xff]
        %v330 = vld [vmem:[%s226 + $0x140] sm:$0xff]
        %v331 = vld [vmem:[%s226 + $0x148] sm:$0xff]
        %v332 = vld [vmem:[%s226 + $0x150] sm:$0xff]
        %v333 = vld [vmem:[%s226 + $0x158] sm:$0xff]
        %v334 = vld [vmem:[%s226 + $0x160] sm:$0xff]
        %v335 = vld [vmem:[%s226 + $0x168] sm:$0xff]
        %v336 = vld [vmem:[%s226 + $0x170] sm:$0xff]
        %v337 = vld [vmem:[%s226 + $0x178] sm:$0xff]
        %v338 = vld [vmem:[%s226 + $0x180] sm:$0xff]
        %v339 = vld [vmem:[%s226 + $0x188] sm:$0xff]
        %v340 = vld [vmem:[%s226 + $0x190] sm:$0xff]
        %v341 = vld [vmem:[%s226 + $0x198] sm:$0xff]
        %v342 = vld [vmem:[%s226 + $0x1a0] sm:$0xff]
        %v343 = vld [vmem:[%s226 + $0x1a8] sm:$0xff]
        %v344 = vld [vmem:[%s226 + $0x1b0] sm:$0xff]
        %v345 = vld [vmem:[%s226 + $0x1b8] sm:$0xff]
        %v346 = vld [vmem:[%s226 + $0x1c0] sm:$0xff]
        %v347 = vld [vmem:[%s226 + $0x1c8] sm:$0xff]
        %v348 = vld [vmem:[%s226 + $0x1d0] sm:$0xff]
        %v349 = vld [vmem:[%s226 + $0x1d8] sm:$0xff]
        %v350 = vld [vmem:[%s226 + $0x1e0] sm:$0xff]
        %v351 = vld [vmem:[%s226 + $0x1e8] sm:$0xff]
        %v352 = vld [vmem:[%s226 + $0x1f0] sm:$0xff]
        %v353 = vld [vmem:[%s226 + $0x1f8] sm:$0xff]
        %v356 = vunpack.c.l.b16 %v288
        %v357 = vunpack.c.h.b16 %v288
        %v358 = vunpack.c.l.b16 %v289
        %v359 = vunpack.c.h.b16 %v289
        %v360 = vpack.c.b16 %v356, %v356
        %v361 = vpack.c.b16 %v357, %v357
        %v362 = vpack.c.b16 %v358, %v358
        %v363 = vpack.c.b16 %v359, %v359
        %v432 = vunpack.c.l.b16 %v290
        %v433 = vunpack.c.h.b16 %v290
        %v434 = vunpack.c.l.b16 %v291
        %v435 = vunpack.c.h.b16 %v291
        %v436 = vunpack.c.l.b16 %v292
        %v437 = vunpack.c.h.b16 %v292
        %v438 = vunpack.c.l.b16 %v293
        %v439 = vunpack.c.h.b16 %v293
        %v440 = vunpack.c.l.b16 %v294
        %v441 = vunpack.c.h.b16 %v294
        %v442 = vunpack.c.l.b16 %v295
        %v443 = vunpack.c.h.b16 %v295
        %v444 = vunpack.c.l.b16 %v296
        %v445 = vunpack.c.h.b16 %v296
        %v446 = vunpack.c.l.b16 %v297
        %v447 = vunpack.c.h.b16 %v297
        %v448 = vunpack.c.l.b16 %v298
        %v449 = vunpack.c.h.b16 %v298
        %v450 = vunpack.c.l.b16 %v299
        %v451 = vunpack.c.h.b16 %v299
        %v452 = vunpack.c.l.b16 %v300
        %v453 = vunpack.c.h.b16 %v300
        %v454 = vunpack.c.l.b16 %v301
        %v455 = vunpack.c.h.b16 %v301
        %v456 = vunpack.c.l.b16 %v302
        %v457 = vunpack.c.h.b16 %v302
        %v458 = vunpack.c.l.b16 %v303
        %v459 = vunpack.c.h.b16 %v303
        %v460 = vunpack.c.l.b16 %v304
        %v461 = vunpack.c.h.b16 %v304
        %v462 = vunpack.c.l.b16 %v305
        %v463 = vunpack.c.h.b16 %v305
        %v464 = vunpack.c.l.b16 %v306
        %v465 = vunpack.c.h.b16 %v306
        %v466 = vunpack.c.l.b16 %v307
        %v467 = vunpack.c.h.b16 %v307
        %v468 = vunpack.c.l.b16 %v308
        %v469 = vunpack.c.h.b16 %v308
        %v470 = vunpack.c.l.b16 %v309
        %v471 = vunpack.c.h.b16 %v309
        %v472 = vunpack.c.l.b16 %v310
        %v473 = vunpack.c.h.b16 %v310
        %v474 = vunpack.c.l.b16 %v311
        %v475 = vunpack.c.h.b16 %v311
        %v476 = vunpack.c.l.b16 %v312
        %v477 = vunpack.c.h.b16 %v312
        %v478 = vunpack.c.l.b16 %v313
        %v479 = vunpack.c.h.b16 %v313
        %v480 = vunpack.c.l.b16 %v314
        %v481 = vunpack.c.h.b16 %v314
        %v482 = vunpack.c.l.b16 %v315
        %v483 = vunpack.c.h.b16 %v315
        %v484 = vunpack.c.l.b16 %v316
        %v485 = vunpack.c.h.b16 %v316
        %v486 = vunpack.c.l.b16 %v317
        %v487 = vunpack.c.h.b16 %v317
        %v488 = vunpack.c.l.b16 %v318
        %v489 = vunpack.c.h.b16 %v318
        %v490 = vunpack.c.l.b16 %v319
        %v491 = vunpack.c.h.b16 %v319
        %v492 = vunpack.c.l.b16 %v320
        %v493 = vunpack.c.h.b16 %v320
        %v494 = vunpack.c.l.b16 %v321
        %v495 = vunpack.c.h.b16 %v321
        %v496 = vunpack.c.l.b16 %v322
        %v497 = vunpack.c.h.b16 %v322
        %v498 = vunpack.c.l.b16 %v323
        %v499 = vunpack.c.h.b16 %v323
        %v500 = vunpack.c.l.b16 %v324
        %v501 = vunpack.c.h.b16 %v324
        %v502 = vunpack.c.l.b16 %v325
        %v503 = vunpack.c.h.b16 %v325
        %v504 = vunpack.c.l.b16 %v326
        %v505 = vunpack.c.h.b16 %v326
        %v506 = vunpack.c.l.b16 %v327
        %v507 = vunpack.c.h.b16 %v327
        %v508 = vunpack.c.l.b16 %v328
        %v509 = vunpack.c.h.b16 %v328
        %v510 = vunpack.c.l.b16 %v329
        %v511 = vunpack.c.h.b16 %v329
        %v512 = vunpack.c.l.b16 %v330
        %v513 = vunpack.c.h.b16 %v330
        %v514 = vunpack.c.l.b16 %v331
        %v515 = vunpack.c.h.b16 %v331
        %v516 = vunpack.c.l.b16 %v332
        %v517 = vunpack.c.h.b16 %v332
        %v518 = vunpack.c.l.b16 %v333
        %v519 = vunpack.c.h.b16 %v333
        %v520 = vunpack.c.l.b16 %v334
        %v521 = vunpack.c.h.b16 %v334
        %v522 = vunpack.c.l.b16 %v335
        %v523 = vunpack.c.h.b16 %v335
        %v524 = vunpack.c.l.b16 %v336
        %v525 = vunpack.c.h.b16 %v336
        %v526 = vunpack.c.l.b16 %v337
        %v527 = vunpack.c.h.b16 %v337
        %v528 = vunpack.c.l.b16 %v338
        %v529 = vunpack.c.h.b16 %v338
        %v530 = vunpack.c.l.b16 %v339
        %v531 = vunpack.c.h.b16 %v339
        %v532 = vunpack.c.l.b16 %v340
        %v533 = vunpack.c.h.b16 %v340
        %v534 = vunpack.c.l.b16 %v341
        %v535 = vunpack.c.h.b16 %v341
        %v536 = vunpack.c.l.b16 %v342
        %v537 = vunpack.c.h.b16 %v342
        %v538 = vunpack.c.l.b16 %v343
        %v539 = vunpack.c.h.b16 %v343
        %v540 = vunpack.c.l.b16 %v344
        %v541 = vunpack.c.h.b16 %v344
        %v542 = vunpack.c.l.b16 %v345
        %v543 = vunpack.c.h.b16 %v345
        %v544 = vunpack.c.l.b16 %v346
        %v545 = vunpack.c.h.b16 %v346
        %v546 = vunpack.c.l.b16 %v347
        %v547 = vunpack.c.h.b16 %v347
        %v548 = vunpack.c.l.b16 %v348
        %v549 = vunpack.c.h.b16 %v348
        %v550 = vunpack.c.l.b16 %v349
        %v551 = vunpack.c.h.b16 %v349
        %v552 = vunpack.c.l.b16 %v350
        %v553 = vunpack.c.h.b16 %v350
        %v554 = vunpack.c.l.b16 %v351
        %v555 = vunpack.c.h.b16 %v351
        %v556 = vunpack.c.l.b16 %v352
        %v557 = vunpack.c.h.b16 %v352
        %v558 = vunpack.c.l.b16 %v353
        %v559 = vunpack.c.h.b16 %v353
        %v560 = vpack.c.b16 %v434, %v432
        %v561 = vpack.c.b16 %v435, %v433
        %v562 = vpack.c.b16 %v438, %v436
        %v563 = vpack.c.b16 %v439, %v437
        %v564 = vpack.c.b16 %v442, %v440
        %v565 = vpack.c.b16 %v443, %v441
        %v566 = vpack.c.b16 %v446, %v444
        %v567 = vpack.c.b16 %v447, %v445
        %v568 = vpack.c.b16 %v450, %v448
        %v569 = vpack.c.b16 %v451, %v449
        %v570 = vpack.c.b16 %v454, %v452
        %v571 = vpack.c.b16 %v455, %v453
        %v572 = vpack.c.b16 %v458, %v456
        %v573 = vpack.c.b16 %v459, %v457
        %v574 = vpack.c.b16 %v462, %v460
        %v575 = vpack.c.b16 %v463, %v461
        %v576 = vpack.c.b16 %v466, %v464
        %v577 = vpack.c.b16 %v467, %v465
        %v578 = vpack.c.b16 %v470, %v468
        %v579 = vpack.c.b16 %v471, %v469
        %v580 = vpack.c.b16 %v474, %v472
        %v581 = vpack.c.b16 %v475, %v473
        %v582 = vpack.c.b16 %v478, %v476
        %v583 = vpack.c.b16 %v479, %v477
        %v584 = vpack.c.b16 %v482, %v480
        %v585 = vpack.c.b16 %v483, %v481
        %v586 = vpack.c.b16 %v486, %v484
        %v587 = vpack.c.b16 %v487, %v485
        %v588 = vpack.c.b16 %v490, %v488
        %v589 = vpack.c.b16 %v491, %v489
        %v590 = vpack.c.b16 %v494, %v492
        %v591 = vpack.c.b16 %v495, %v493
        %v592 = vpack.c.b16 %v498, %v496
        %v593 = vpack.c.b16 %v499, %v497
        %v594 = vpack.c.b16 %v502, %v500
        %v595 = vpack.c.b16 %v503, %v501
        %v596 = vpack.c.b16 %v506, %v504
        %v597 = vpack.c.b16 %v507, %v505
        %v598 = vpack.c.b16 %v510, %v508
        %v599 = vpack.c.b16 %v511, %v509
        %v600 = vpack.c.b16 %v514, %v512
        %v601 = vpack.c.b16 %v515, %v513
        %v602 = vpack.c.b16 %v518, %v516
        %v603 = vpack.c.b16 %v519, %v517
        %v604 = vpack.c.b16 %v522, %v520
        %v605 = vpack.c.b16 %v523, %v521
        %v606 = vpack.c.b16 %v526, %v524
        %v607 = vpack.c.b16 %v527, %v525
        %v608 = vpack.c.b16 %v530, %v528
        %v609 = vpack.c.b16 %v531, %v529
        %v610 = vpack.c.b16 %v534, %v532
        %v611 = vpack.c.b16 %v535, %v533
        %v612 = vpack.c.b16 %v538, %v536
        %v613 = vpack.c.b16 %v539, %v537
        %v614 = vpack.c.b16 %v542, %v540
        %v615 = vpack.c.b16 %v543, %v541
        %v616 = vpack.c.b16 %v546, %v544
        %v617 = vpack.c.b16 %v547, %v545
        %v618 = vpack.c.b16 %v550, %v548
        %v619 = vpack.c.b16 %v551, %v549
        %v620 = vpack.c.b16 %v554, %v552
        %v621 = vpack.c.b16 %v555, %v553
        %v622 = vpack.c.b16 %v558, %v556
        %v623 = vpack.c.b16 %v559, %v557
        %688 = vmatprep.subr.bf16.mxu0 %v561
        %689 = vmatpush1.bf16.msra.mxu0 %v560
        %690 = vmatprep.subr.bf16.mxu0 %v563
        %691 = vmatpush1.bf16.msra.mxu0 %v562
        %692 = vmatprep.subr.bf16.mxu0 %v565
        %693 = vmatpush1.bf16.msra.mxu0 %v564
        %694 = vmatprep.subr.bf16.mxu0 %v567
        %695 = vmatpush1.bf16.msra.mxu0 %v566
        %696 = vmatprep.subr.bf16.mxu0 %v569
        %697 = vmatpush1.bf16.msra.mxu0 %v568
        %698 = vmatprep.subr.bf16.mxu0 %v571
        %699 = vmatpush1.bf16.msra.mxu0 %v570
        %700 = vmatprep.subr.bf16.mxu0 %v573
        %701 = vmatpush1.bf16.msra.mxu0 %v572
        %702 = vmatprep.subr.bf16.mxu0 %v575
        %703 = vmatpush1.bf16.msra.mxu0 %v574
        %704 = vmatprep.subr.bf16.mxu0 %v577
        %705 = vmatpush1.bf16.msra.mxu0 %v576
        %706 = vmatprep.subr.bf16.mxu0 %v579
        %707 = vmatpush1.bf16.msra.mxu0 %v578
        %708 = vmatprep.subr.bf16.mxu0 %v581
        %709 = vmatpush1.bf16.msra.mxu0 %v580
        %710 = vmatprep.subr.bf16.mxu0 %v583
        %711 = vmatpush1.bf16.msra.mxu0 %v582
        %712 = vmatprep.subr.bf16.mxu0 %v585
        %713 = vmatpush1.bf16.msra.mxu0 %v584
        %714 = vmatprep.subr.bf16.mxu0 %v587
        %715 = vmatpush1.bf16.msra.mxu0 %v586
        %716 = vmatprep.subr.bf16.mxu0 %v589
        %717 = vmatpush1.bf16.msra.mxu0 %v588
        %718 = vmatprep.subr.bf16.mxu0 %v591
        %719 = vmatpush1.bf16.msra.mxu0 %v590
        %720 = vmatprep.mubr.bf16.mxu0 %v361
        %721 = vmatmul.mubr.bf16.gmra.mrb[0].mxu0 %v360
        %v722 = vpop.f32.mrb[0].mxu0
        %v723 = vadd.f32 0.0, %v722
        %v724 = vpop.f32.mrb[0].mxu0
        %v725 = vadd.f32 0.0, %v724
        %v726 = vpop.f32.mrb[0].mxu0
        %v727 = vpop.f32.mrb[0].mxu0
        %728 = vdwg.mxu0
        %729 = vmatprep.subr.bf16.mxu0 %v593
        %730 = vmatpush1.bf16.msra.mxu0 %v592
        %731 = vmatprep.subr.bf16.mxu0 %v595
        %732 = vmatpush1.bf16.msra.mxu0 %v594
        %733 = vmatprep.subr.bf16.mxu0 %v597
        %734 = vmatpush1.bf16.msra.mxu0 %v596
        %735 = vmatprep.subr.bf16.mxu0 %v599
        %736 = vmatpush1.bf16.msra.mxu0 %v598
        %737 = vmatprep.subr.bf16.mxu0 %v601
        %738 = vmatpush1.bf16.msra.mxu0 %v600
        %739 = vmatprep.subr.bf16.mxu0 %v603
        %740 = vmatpush1.bf16.msra.mxu0 %v602
        %741 = vmatprep.subr.bf16.mxu0 %v605
        %742 = vmatpush1.bf16.msra.mxu0 %v604
        %743 = vmatprep.subr.bf16.mxu0 %v607
        %744 = vmatpush1.bf16.msra.mxu0 %v606
        %745 = vmatprep.subr.bf16.mxu0 %v609
        %746 = vmatpush1.bf16.msra.mxu0 %v608
        %747 = vmatprep.subr.bf16.mxu0 %v611
        %748 = vmatpush1.bf16.msra.mxu0 %v610
        %749 = vmatprep.subr.bf16.mxu0 %v613
        %750 = vmatpush1.bf16.msra.mxu0 %v612
        %751 = vmatprep.subr.bf16.mxu0 %v615
        %752 = vmatpush1.bf16.msra.mxu0 %v614
        %753 = vmatprep.subr.bf16.mxu0 %v617
        %754 = vmatpush1.bf16.msra.mxu0 %v616
        %755 = vmatprep.subr.bf16.mxu0 %v619
        %756 = vmatpush1.bf16.msra.mxu0 %v618
        %757 = vmatprep.subr.bf16.mxu0 %v621
        %758 = vmatpush1.bf16.msra.mxu0 %v620
        %759 = vmatprep.subr.bf16.mxu0 %v623
        %760 = vmatpush1.bf16.msra.mxu0 %v622
        %761 = vmatprep.mubr.bf16.mxu0 %v363
        %762 = vmatmul.mubr.bf16.gmra.mrb[0].mxu0 %v362
        %v763 = vpop.f32.mrb[0].mxu0
        %v764 = vadd.f32 %v723, %v763
        %v765 = vpop.f32.mrb[0].mxu0
        %v766 = vadd.f32 %v725, %v765
        %v767 = vpop.f32.mrb[0].mxu0
        %v768 = vpop.f32.mrb[0].mxu0
        %769 = vdwg.mxu0
        %v770 = vadd.f32 %v283, %v764
        %v771 = vadd.f32 %v284, %v766
        %772 = vst [vmem:[#allocation2] sm:$0xff] %v770
        %773 = vst [vmem:[#allocation2 + $0x8] sm:$0xff] %v771
        %p774 = scmp.eq.s32.totalorder %s23, 1
        // Predicated region
        $region45: #{tpu_custom_call.1} parent=35 // pred_check
          %p775 = pneg %p774
        $region46: #{tpu_custom_call.1} parent=35 // pred_check_branch
          %777 = sbr.rel (%p775) target = $region48
        $region47: #{tpu_custom_call.1} parent=35 // pred_region
          %v778 = vld [vmem:[#allocation2] sm:$0xff]
          %v779 = vld [vmem:[#allocation2 + $0x8] sm:$0xff]
          %v780 = vld [vmem:[%s264] sm:$0x3]
          %v782 = vlaneseq
          %v783 = vshrl.u32 %v782, 7
          %v784 = vsub.s32 0, %v783
          %v785 = vrot.slane %v780, %v784
          %v786 = vlaneseq
          %v787 = vshrl.u32 %v786, 7
          %v788 = vsub.s32 1, %v787
          %v789 = vrot.slane %v780, %v788
          %v792 = vadd.f32 %v778, %v785
          %v793 = vadd.f32 %v779, %v789
          %v794 = vmax.f32 %v792, 0.0
          %v795 = vmax.f32 %v793, 0.0
          %v796 = vpack.c.bf16 %v794, %v794
          %v797 = vpack.c.bf16 %v795, %v795
          %v798 = vld [vmem:[%s270] sm:$0xf]
          %v799 = vld [vmem:[%s270 + $0x4] sm:$0xf]
          %v800 = vld [vmem:[%s270 + $0x8] sm:$0xf]
          %v801 = vld [vmem:[%s270 + $0xc] sm:$0xf]
          %v802 = vld [vmem:[%s270 + $0x10] sm:$0xf]
          %v803 = vld [vmem:[%s270 + $0x14] sm:$0xf]
          %v804 = vld [vmem:[%s270 + $0x18] sm:$0xf]
          %v805 = vld [vmem:[%s270 + $0x1c] sm:$0xf]
          %v806 = vld [vmem:[%s270 + $0x20] sm:$0xf]
          %v807 = vld [vmem:[%s270 + $0x24] sm:$0xf]
          %v808 = vld [vmem:[%s270 + $0x28] sm:$0xf]
          %v809 = vld [vmem:[%s270 + $0x2c] sm:$0xf]
          %v810 = vld [vmem:[%s270 + $0x30] sm:$0xf]
          %v811 = vld [vmem:[%s270 + $0x34] sm:$0xf]
          %v812 = vld [vmem:[%s270 + $0x38] sm:$0xf]
          %v813 = vld [vmem:[%s270 + $0x3c] sm:$0xf]
          %v814 = vld [vmem:[%s270 + $0x40] sm:$0xf]
          %v815 = vld [vmem:[%s270 + $0x44] sm:$0xf]
          %v816 = vld [vmem:[%s270 + $0x48] sm:$0xf]
          %v817 = vld [vmem:[%s270 + $0x4c] sm:$0xf]
          %v818 = vld [vmem:[%s270 + $0x50] sm:$0xf]
          %v819 = vld [vmem:[%s270 + $0x54] sm:$0xf]
          %v820 = vld [vmem:[%s270 + $0x58] sm:$0xf]
          %v821 = vld [vmem:[%s270 + $0x5c] sm:$0xf]
          %v822 = vld [vmem:[%s270 + $0x60] sm:$0xf]
          %v823 = vld [vmem:[%s270 + $0x64] sm:$0xf]
          %v824 = vld [vmem:[%s270 + $0x68] sm:$0xf]
          %v825 = vld [vmem:[%s270 + $0x6c] sm:$0xf]
          %v826 = vld [vmem:[%s270 + $0x70] sm:$0xf]
          %v827 = vld [vmem:[%s270 + $0x74] sm:$0xf]
          %v828 = vld [vmem:[%s270 + $0x78] sm:$0xf]
          %v829 = vld [vmem:[%s270 + $0x7c] sm:$0xf]
          %v862 = vunpack.c.l.b16 %v798
          %v863 = vunpack.c.l.b16 %v799
          %v864 = vunpack.c.l.b16 %v800
          %v865 = vunpack.c.l.b16 %v801
          %v866 = vunpack.c.l.b16 %v802
          %v867 = vunpack.c.l.b16 %v803
          %v868 = vunpack.c.l.b16 %v804
          %v869 = vunpack.c.l.b16 %v805
          %v870 = vunpack.c.l.b16 %v806
          %v871 = vunpack.c.l.b16 %v807
          %v872 = vunpack.c.l.b16 %v808
          %v873 = vunpack.c.l.b16 %v809
          %v874 = vunpack.c.l.b16 %v810
          %v875 = vunpack.c.l.b16 %v811
          %v876 = vunpack.c.l.b16 %v812
          %v877 = vunpack.c.l.b16 %v813
          %v878 = vunpack.c.l.b16 %v814
          %v879 = vunpack.c.l.b16 %v815
          %v880 = vunpack.c.l.b16 %v816
          %v881 = vunpack.c.l.b16 %v817
          %v882 = vunpack.c.l.b16 %v818
          %v883 = vunpack.c.l.b16 %v819
          %v884 = vunpack.c.l.b16 %v820
          %v885 = vunpack.c.l.b16 %v821
          %v886 = vunpack.c.l.b16 %v822
          %v887 = vunpack.c.l.b16 %v823
          %v888 = vunpack.c.l.b16 %v824
          %v889 = vunpack.c.l.b16 %v825
          %v890 = vunpack.c.l.b16 %v826
          %v891 = vunpack.c.l.b16 %v827
          %v892 = vunpack.c.l.b16 %v828
          %v893 = vunpack.c.l.b16 %v829
          %v894 = vpack.c.b16 %v863, %v862
          %v895 = vpack.c.b16 %v865, %v864
          %v896 = vpack.c.b16 %v867, %v866
          %v897 = vpack.c.b16 %v869, %v868
          %v898 = vpack.c.b16 %v871, %v870
          %v899 = vpack.c.b16 %v873, %v872
          %v900 = vpack.c.b16 %v875, %v874
          %v901 = vpack.c.b16 %v877, %v876
          %v902 = vpack.c.b16 %v879, %v878
          %v903 = vpack.c.b16 %v881, %v880
          %v904 = vpack.c.b16 %v883, %v882
          %v905 = vpack.c.b16 %v885, %v884
          %v906 = vpack.c.b16 %v887, %v886
          %v907 = vpack.c.b16 %v889, %v888
          %v908 = vpack.c.b16 %v891, %v890
          %v909 = vpack.c.b16 %v893, %v892
          %926 = vmatprep.subr.bf16.mxu0 0
          %927 = vmatpush1.bf16.msra.mxu0 %v894
          %928 = vmatprep.subr.bf16.mxu0 0
          %929 = vmatpush1.bf16.msra.mxu0 %v895
          %930 = vmatprep.subr.bf16.mxu0 0
          %931 = vmatpush1.bf16.msra.mxu0 %v896
          %932 = vmatprep.subr.bf16.mxu0 0
          %933 = vmatpush1.bf16.msra.mxu0 %v897
          %934 = vmatprep.subr.bf16.mxu0 0
          %935 = vmatpush1.bf16.msra.mxu0 %v898
          %936 = vmatprep.subr.bf16.mxu0 0
          %937 = vmatpush1.bf16.msra.mxu0 %v899
          %938 = vmatprep.subr.bf16.mxu0 0
          %939 = vmatpush1.bf16.msra.mxu0 %v900
          %940 = vmatprep.subr.bf16.mxu0 0
          %941 = vmatpush1.bf16.msra.mxu0 %v901
          %942 = vmatprep.subr.bf16.mxu0 0
          %943 = vmatpush1.bf16.msra.mxu0 %v902
          %944 = vmatprep.subr.bf16.mxu0 0
          %945 = vmatpush1.bf16.msra.mxu0 %v903
          %946 = vmatprep.subr.bf16.mxu0 0
          %947 = vmatpush1.bf16.msra.mxu0 %v904
          %948 = vmatprep.subr.bf16.mxu0 0
          %949 = vmatpush1.bf16.msra.mxu0 %v905
          %950 = vmatprep.subr.bf16.mxu0 0
          %951 = vmatpush1.bf16.msra.mxu0 %v906
          %952 = vmatprep.subr.bf16.mxu0 0
          %953 = vmatpush1.bf16.msra.mxu0 %v907
          %954 = vmatprep.subr.bf16.mxu0 0
          %955 = vmatpush1.bf16.msra.mxu0 %v908
          %956 = vmatprep.subr.bf16.mxu0 0
          %957 = vmatpush1.bf16.msra.mxu0 %v909
          %958 = vmatprep.mubr.bf16.mxu0 %v797
          %959 = vmatmul.mubr.bf16.gmra.mrb[0].mxu0 %v796
          %v960 = vpop.f32.mrb[0].mxu0
          %v961 = vadd.f32 0.0, %v960
          %v962 = vpop.f32.mrb[0].mxu0
          %v963 = vpop.f32.mrb[0].mxu0
          %v964 = vpop.f32.mrb[0].mxu0
          %965 = vdwg.mxu0
          %vm966 = vcmask 15360
          %967 = vst.msk [vmem:[%s275] sm:$0xff] %vm966, %v961
        $region48: #{tpu_custom_call.1} parent=35 // pred_fallthru
          _
        %p968 = scmp.lt.s32.totalorder %s22, 1
        %s969 = scalar_select %p968, %s22, 1
        %s970 = smul.addr %s969, 8
        %s971 = scalar_lea.vmem %s4, %s970
        // Predicated region
        $region49: #{tpu_custom_call.1} parent=35 // pred_check
          %p972 = pneg %p149
        $region50: #{tpu_custom_call.1} parent=35 // pred_check_branch
          %974 = sbr.rel (%p972) target = $region52
        $region51: #{tpu_custom_call.1} parent=35 // pred_region
          _
        $region52: #{tpu_custom_call.1} parent=35 // pred_fallthru
          _
      $region36: #{tpu_custom_call.1} parent=5 // pred_fallthru
        _
      %p975 = scmp.le.s32.totalorder 2, %s13
      // Predicated region
      $region53: #{tpu_custom_call.1} parent=5 // pred_check
        %p976 = pneg %p975
      $region54: #{tpu_custom_call.1} parent=5 // pred_check_branch
        %978 = sbr.rel (%p976) target = $region56
      $region55: #{tpu_custom_call.1} parent=5 // pred_region
        %s979 = ssub.s32 %s13, 2
        // Predicated region
        $region57: #{tpu_custom_call.1} parent=55 // pred_check
          %p980 = pneg %p155
        $region58: #{tpu_custom_call.1} parent=55 // pred_check_branch
          %982 = sbr.rel (%p980) target = $region60
        $region59: #{tpu_custom_call.1} parent=55 // pred_region
          %p983 = scmp.lt.s32.totalorder %s24, 1
          %s984 = scalar_select %p983, %s24, 1
          %s985 = smul.addr %s984, 8
          %s986 = scalar_lea.vmem %s4, %s985
        $region60: #{tpu_custom_call.1} parent=55 // pred_fallthru
          _
      $region56: #{tpu_custom_call.1} parent=5 // pred_fallthru
        _
    $region6: #{tpu_custom_call.1} parent=1 // loop_footer
      %s17 = sadd.s32 1, %s13
    $region7: #{tpu_custom_call.1} parent=1 // loop_footer_branch
      %12 = sbr.rel target = $region3
    $region8: #{tpu_custom_call.1} parent=1 // loop_exit
      _
    %987 = vsyncpa [#allocation4], 1
    %s988 = scalar_lea.sflag [#allocation4], 1
    %989 = vsyncpa %s988, 1

</llo_original>
